<compile_context>
chip_gen: v6e
topology: v6e:2x2x1
jax: 0.10.0
libtpu: 0.0.40
codegen_flags: <defaults>
</compile_context>

<pallas_src>
import jax
import jax.numpy as jnp
from jax.experimental import pallas as pl
from jax.experimental.pallas import tpu as pltpu

_LANES = 128


def _dice_partials_kernel(pred_ref, targ_ref, inter_ref, union_ref,
                          acc_i_ref, acc_u_ref):
    """Accumulate per-(batch, split) per-class intersection / union sums.

    pred_ref, targ_ref   : (1, C, s_blk, 128) VMEM input tiles (sublane-dense).
    inter_ref, union_ref : (1, 1, C) output blocks, resident across the inner
                           (reduction) grid axis; written once on the last step.
    acc_i_ref, acc_u_ref : (1, C, 128) f32 VMEM scratch holding lane-wise
                           partial sums (cross-lane reduce deferred).
    """
    l = pl.program_id(2)

    @pl.when(l == 0)
    def _():
        acc_i_ref[...] = jnp.zeros_like(acc_i_ref)
        acc_u_ref[...] = jnp.zeros_like(acc_u_ref)

    p = pred_ref[...].astype(jnp.float32)   # (1, C, s_blk, 128)
    t = targ_ref[...].astype(jnp.float32)

    # VPU elementwise + one sublane reduce per step; the lane reduce and the
    # narrow (C-wide) output store only happen on the last reduction step.
    acc_i_ref[...] += jnp.sum(p * t, axis=2)   # (1, C, 128)
    acc_u_ref[...] += jnp.sum(p + t, axis=2)   # fused union = sum(p)+sum(t)

    @pl.when(l == pl.num_programs(2) - 1)
    def _():
        inter_ref[...] = jnp.sum(acc_i_ref[...], axis=-1)[:, None, :]  # (1,1,C)
        union_ref[...] = jnp.sum(acc_u_ref[...], axis=-1)[:, None, :]


def dice_loss_2d_multiclass(prediction, target, num_classes, smooth=1e-5,
                            tile_bytes_cap=4 << 20):
    """prediction, target: (N, C, H, W) arrays; target already one-hot."""
    N, C, H, W = prediction.shape
    assert C == num_classes and num_classes > 1
    assert target.shape == prediction.shape
    HW = H * W

    # Contiguous reshape to (N, C, HW) — no HBM copy.
    pred = prediction.reshape(N, C, HW)
    targ = target.reshape(N, C, HW)

    # Zero-pad the spatial axis up to a multiple of 128 lanes (zeros are
    # neutral for both intersection and union sums).
    hw_pad = pl.cdiv(HW, _LANES) * _LANES
    if hw_pad != HW:
        pad = hw_pad - HW
        pred = jnp.pad(pred, ((0, 0), (0, 0), (0, pad)))
        targ = jnp.pad(targ, ((0, 0), (0, 0), (0, pad)))
    S = hw_pad // _LANES

    # Sublane-dense 4D layout: (N, C, S, 128) — last two dims map to
    # (sublane, lane), so tiles/vregs are fully dense regardless of C.
    pred = pred.reshape(N, C, S, _LANES)
    targ = targ.reshape(N, C, S, _LANES)

    # Pick the sublane-chunk so each input tile is <= ~tile_bytes_cap
    # (multiple of 8 sublanes, or the full extent).
    itemsize = max(pred.dtype.itemsize, targ.dtype.itemsize)
    max_s_blk = max(8, (tile_bytes_cap // (C * _LANES * itemsize)) // 8 * 8)
    if S <= max_s_blk:
        s_blk = S                       # full extent: (8,128) rule is trivially met
    else:
        s_blk = max_s_blk
        s_pad = pl.cdiv(S, s_blk) * s_blk
        if s_pad != S:                  # zero-pad S to a multiple of the block
            pred = jnp.pad(pred, ((0, 0), (0, 0), (0, s_pad - S), (0, 0)))
            targ = jnp.pad(targ, ((0, 0), (0, 0), (0, s_pad - S), (0, 0)))
            S = s_pad

    l_total = S // s_blk
    # Extra parallel split of the reduction so a v7x megacore stays busy even
    # when N is 1 or odd; harmless on single-TC v5e/v6e.
    n_split = 2 if (l_total >= 2 and l_total % 2 == 0) else 1
    inner = l_total // n_split

    # Explicit scoped-VMEM budget: 2 inputs x 2 pipeline buffers x tile + margin.
    tile_bytes = C * s_blk * _LANES * (pred.dtype.itemsize + targ.dtype.itemsize)
    vmem_limit = int(min(64 << 20, max(32 << 20, 2 * tile_bytes + (8 << 20))))

    in_spec = pl.BlockSpec((1, C, s_blk, _LANES),
                           lambda n, sp, l: (n, 0, sp * inner + l, 0))
    out_spec = pl.BlockSpec((1, 1, C),
                            lambda n, sp, l: (n * n_split + sp, 0, 0))

    inter_nc, union_nc = pl.pallas_call(
        _dice_partials_kernel,
        out_shape=(
            jax.ShapeDtypeStruct((N * n_split, 1, C), jnp.float32),
            jax.ShapeDtypeStruct((N * n_split, 1, C), jnp.float32),
        ),
        grid_spec=pltpu.PrefetchScalarGridSpec(
            num_scalar_prefetch=0,
            grid=(N, n_split, inner),
            in_specs=[in_spec, in_spec],
            out_specs=[out_spec, out_spec],
            scratch_shapes=[
                pltpu.VMEM((1, C, _LANES), jnp.float32),
                pltpu.VMEM((1, C, _LANES), jnp.float32),
            ],
        ),
        compiler_params=pltpu.CompilerParams(
            dimension_semantics=("parallel", "parallel", "arbitrary"),
            vmem_limit_bytes=vmem_limit),
    )(pred, targ)

    # Tiny finalize in plain JAX (a handful of scalars).
    inter_c = jnp.sum(inter_nc, axis=(0, 1))    # (C,)
    union_c = jnp.sum(union_nc, axis=(0, 1))    # (C,)
    dice = (2.0 * inter_c + smooth) / (union_c + smooth)
    # Mean over classes 1..num_classes-1 (background class 0 is skipped).
    return jnp.mean(1.0 - dice[1:])


def _reference(prediction, target, num_classes, smooth=1e-5):
    losses = []
    for c in range(1, num_classes):
        p = prediction[:, c, :, :]
        t = target[:, c, :, :]
        inter = jnp.sum(p * t)
        union = jnp.sum(p) + jnp.sum(t)
        dice = (2.0 * inter + smooth) / (union + smooth)
        losses.append(1.0 - dice)
    return jnp.mean(jnp.stack(losses))


if __name__ == "__main__":
    NUM_CLASSES = 4
    SMOOTH = 1e-5
    N, C, H, W = 2, NUM_CLASSES, 16, 16

    key = jax.random.PRNGKey(0)
    k_pred, k_lab = jax.random.split(key)

    # Prediction: softmax over the class axis (typical segmentation output).
    logits = jax.random.normal(k_pred, (N, C, H, W), dtype=jnp.float32)
    prediction = jax.nn.softmax(logits, axis=1)

    # Target: one-hot encoded random labels, shape (N, C, H, W).
    labels = jax.random.randint(k_lab, (N, H, W), 0, NUM_CLASSES)
    target = jnp.transpose(
        jax.nn.one_hot(labels, NUM_CLASSES, dtype=jnp.float32), (0, 3, 1, 2))

    loss = dice_loss_2d_multiclass(prediction, target, NUM_CLASSES, SMOOTH)
    loss = jax.block_until_ready(loss)

    ref = _reference(prediction, target, NUM_CLASSES, SMOOTH)
    assert jnp.allclose(loss, ref, atol=1e-5, rtol=1e-5), (loss, ref)

    print("KERNEL_OK")
</pallas_src>

<mosaic_0001>
module attributes {stable_mosaic.version = 11 : i64} {
  func.func @_dice_partials_kernel(%arg0: i32, %arg1: i32, %arg2: i32, %arg3: memref<1x4x2x128xf32, #tpu.memory_space<vmem>>, %arg4: memref<1x4x2x128xf32, #tpu.memory_space<vmem>>, %arg5: memref<1x1x4xf32, #tpu.memory_space<vmem>>, %arg6: memref<1x1x4xf32, #tpu.memory_space<vmem>>, %arg7: memref<1x4x128xf32, #tpu.memory_space<vmem>>, %arg8: memref<1x4x128xf32, #tpu.memory_space<vmem>>) attributes {dimension_semantics = [#tpu.dimension_semantics<parallel>, #tpu.dimension_semantics<parallel>, #tpu.dimension_semantics<arbitrary>], iteration_bounds = array<i64: 2, 1, 1>, scalar_prefetch = 0 : i64, scratch_operands = 2 : i64, tpu.core_type = #tpu.core_type<tc>, window_params = [{transform_indices = @transform_0, window_bounds = array<i64: 1, 4, 2, 128>}, {transform_indices = @transform_1, window_bounds = array<i64: 1, 4, 2, 128>}, {transform_indices = @transform_2, window_bounds = array<i64: 1, 1, 4>}, {transform_indices = @transform_3, window_bounds = array<i64: 1, 1, 4>}]} {
    %c0_i32 = arith.constant 0 : i32
    %0 = arith.cmpi eq, %arg2, %c0_i32 : i32
    %1 = arith.extui %0 : i1 to i32
    %c0_i32_0 = arith.constant 0 : i32
    %2 = arith.cmpi ne, %1, %c0_i32_0 : i32
    scf.if %2 {
      %cst_23 = arith.constant 0.000000e+00 : f32
      %18 = vector.broadcast %cst_23 : f32 to vector<1x4x128xf32>
      %c0_24 = arith.constant 0 : index
      %c0_25 = arith.constant 0 : index
      %c0_26 = arith.constant 0 : index
      %19 = vector.load %arg7[%c0_24, %c0_25, %c0_26] : memref<1x4x128xf32, #tpu.memory_space<vmem>>, vector<1x4x128xf32>
      tpu.vector_store %arg7[%c0_24, %c0_25, %c0_26], %18 {strides = array<i32>} : memref<1x4x128xf32, #tpu.memory_space<vmem>>, vector<1x4x128xf32>,
      %cst_27 = arith.constant 0.000000e+00 : f32
      %20 = vector.broadcast %cst_27 : f32 to vector<1x4x128xf32>
      %c0_28 = arith.constant 0 : index
      %c0_29 = arith.constant 0 : index
      %c0_30 = arith.constant 0 : index
      %21 = vector.load %arg8[%c0_28, %c0_29, %c0_30] : memref<1x4x128xf32, #tpu.memory_space<vmem>>, vector<1x4x128xf32>
      tpu.vector_store %arg8[%c0_28, %c0_29, %c0_30], %20 {strides = array<i32>} : memref<1x4x128xf32, #tpu.memory_space<vmem>>, vector<1x4x128xf32>,
    } else {
    }
    %c0 = arith.constant 0 : index
    %c0_1 = arith.constant 0 : index
    %c0_2 = arith.constant 0 : index
    %c0_3 = arith.constant 0 : index
    %3 = vector.load %arg3[%c0, %c0_1, %c0_2, %c0_3] : memref<1x4x2x128xf32, #tpu.memory_space<vmem>>, vector<1x4x2x128xf32>
    %c0_4 = arith.constant 0 : index
    %c0_5 = arith.constant 0 : index
    %c0_6 = arith.constant 0 : index
    %c0_7 = arith.constant 0 : index
    %4 = vector.load %arg4[%c0_4, %c0_5, %c0_6, %c0_7] : memref<1x4x2x128xf32, #tpu.memory_space<vmem>>, vector<1x4x2x128xf32>
    %c0_8 = arith.constant 0 : index
    %c0_9 = arith.constant 0 : index
    %c0_10 = arith.constant 0 : index
    %5 = vector.load %arg7[%c0_8, %c0_9, %c0_10] : memref<1x4x128xf32, #tpu.memory_space<vmem>>, vector<1x4x128xf32>
    %6 = arith.mulf %3, %4 : vector<1x4x2x128xf32>
    %cst = arith.constant dense<0.000000e+00> : vector<1x4x128xf32>
    %7 = vector.multi_reduction <add>, %6, %cst [2] : vector<1x4x2x128xf32> to vector<1x4x128xf32>
    %8 = arith.addf %5, %7 : vector<1x4x128xf32>
    %c0_11 = arith.constant 0 : index
    %c0_12 = arith.constant 0 : index
    %c0_13 = arith.constant 0 : index
    %9 = vector.load %arg7[%c0_11, %c0_12, %c0_13] : memref<1x4x128xf32, #tpu.memory_space<vmem>>, vector<1x4x128xf32>
    tpu.vector_store %arg7[%c0_11, %c0_12, %c0_13], %8 {strides = array<i32>} : memref<1x4x128xf32, #tpu.memory_space<vmem>>, vector<1x4x128xf32>,
    %c0_14 = arith.constant 0 : index
    %c0_15 = arith.constant 0 : index
    %c0_16 = arith.constant 0 : index
    %10 = vector.load %arg8[%c0_14, %c0_15, %c0_16] : memref<1x4x128xf32, #tpu.memory_space<vmem>>, vector<1x4x128xf32>
    %11 = arith.addf %3, %4 : vector<1x4x2x128xf32>
    %cst_17 = arith.constant dense<0.000000e+00> : vector<1x4x128xf32>
    %12 = vector.multi_reduction <add>, %11, %cst_17 [2] : vector<1x4x2x128xf32> to vector<1x4x128xf32>
    %13 = arith.addf %10, %12 : vector<1x4x128xf32>
    %c0_18 = arith.constant 0 : index
    %c0_19 = arith.constant 0 : index
    %c0_20 = arith.constant 0 : index
    %14 = vector.load %arg8[%c0_18, %c0_19, %c0_20] : memref<1x4x128xf32, #tpu.memory_space<vmem>>, vector<1x4x128xf32>
    tpu.vector_store %arg8[%c0_18, %c0_19, %c0_20], %13 {strides = array<i32>} : memref<1x4x128xf32, #tpu.memory_space<vmem>>, vector<1x4x128xf32>,
    %c0_i32_21 = arith.constant 0 : i32
    %15 = arith.cmpi eq, %arg2, %c0_i32_21 : i32
    %16 = arith.extui %15 : i1 to i32
    %c0_i32_22 = arith.constant 0 : i32
    %17 = arith.cmpi ne, %16, %c0_i32_22 : i32
    scf.if %17 {
      %c0_23 = arith.constant 0 : index
      %c0_24 = arith.constant 0 : index
      %c0_25 = arith.constant 0 : index
      %18 = vector.load %arg7[%c0_23, %c0_24, %c0_25] : memref<1x4x128xf32, #tpu.memory_space<vmem>>, vector<1x4x128xf32>
      %cst_26 = arith.constant dense<0.000000e+00> : vector<1x4xf32>
      %19 = vector.multi_reduction <add>, %18, %cst_26 [2] : vector<1x4x128xf32> to vector<1x4xf32>
      %20 = vector.shape_cast %19 : vector<1x4xf32> to vector<1x1x4xf32>
      %c0_27 = arith.constant 0 : index
      %c0_28 = arith.constant 0 : index
      %c0_29 = arith.constant 0 : index
      %21 = vector.load %arg5[%c0_27, %c0_28, %c0_29] : memref<1x1x4xf32, #tpu.memory_space<vmem>>, vector<1x1x4xf32>
      tpu.vector_store %arg5[%c0_27, %c0_28, %c0_29], %20 {strides = array<i32>} : memref<1x1x4xf32, #tpu.memory_space<vmem>>, vector<1x1x4xf32>,
      %c0_30 = arith.constant 0 : index
      %c0_31 = arith.constant 0 : index
      %c0_32 = arith.constant 0 : index
      %22 = vector.load %arg8[%c0_30, %c0_31, %c0_32] : memref<1x4x128xf32, #tpu.memory_space<vmem>>, vector<1x4x128xf32>
      %cst_33 = arith.constant dense<0.000000e+00> : vector<1x4xf32>
      %23 = vector.multi_reduction <add>, %22, %cst_33 [2] : vector<1x4x128xf32> to vector<1x4xf32>
      %24 = vector.shape_cast %23 : vector<1x4xf32> to vector<1x1x4xf32>
      %c0_34 = arith.constant 0 : index
      %c0_35 = arith.constant 0 : index
      %c0_36 = arith.constant 0 : index
      %25 = vector.load %arg6[%c0_34, %c0_35, %c0_36] : memref<1x1x4xf32, #tpu.memory_space<vmem>>, vector<1x1x4xf32>
      tpu.vector_store %arg6[%c0_34, %c0_35, %c0_36], %24 {strides = array<i32>} : memref<1x1x4xf32, #tpu.memory_space<vmem>>, vector<1x1x4xf32>,
    } else {
    }
    return
  }
  func.func @transform_0(%arg0: i32, %arg1: i32, %arg2: i32) -> (i32, i32, i32, i32) {
    %c1_i32 = arith.constant 1 : i32
    %0 = arith.muli %arg1, %c1_i32 : i32
    %1 = arith.addi %0, %arg2 : i32
    %c0_i32 = arith.constant 0 : i32
    %c0_i32_0 = arith.constant 0 : i32
    %c0_i32_1 = arith.constant 0 : i32
    return %arg0, %c0_i32, %1, %c0_i32_0 : i32, i32, i32, i32
  }
  func.func @transform_1(%arg0: i32, %arg1: i32, %arg2: i32) -> (i32, i32, i32, i32) {
    %c1_i32 = arith.constant 1 : i32
    %0 = arith.muli %arg1, %c1_i32 : i32
    %1 = arith.addi %0, %arg2 : i32
    %c0_i32 = arith.constant 0 : i32
    %c0_i32_0 = arith.constant 0 : i32
    %c0_i32_1 = arith.constant 0 : i32
    return %arg0, %c0_i32, %1, %c0_i32_0 : i32, i32, i32, i32
  }
  func.func @transform_2(%arg0: i32, %arg1: i32, %arg2: i32) -> (i32, i32, i32) {
    %c1_i32 = arith.constant 1 : i32
    %0 = arith.muli %arg0, %c1_i32 : i32
    %1 = arith.addi %0, %arg1 : i32
    %c0_i32 = arith.constant 0 : i32
    %c0_i32_0 = arith.constant 0 : i32
    %c0_i32_1 = arith.constant 0 : i32
    return %1, %c0_i32, %c0_i32_0 : i32, i32, i32
  }
  func.func @transform_3(%arg0: i32, %arg1: i32, %arg2: i32) -> (i32, i32, i32) {
    %c1_i32 = arith.constant 1 : i32
    %0 = arith.muli %arg0, %c1_i32 : i32
    %1 = arith.addi %0, %arg1 : i32
    %c0_i32 = arith.constant 0 : i32
    %c0_i32_0 = arith.constant 0 : i32
    %c0_i32_1 = arith.constant 0 : i32
    return %1, %c0_i32, %c0_i32_0 : i32, i32, i32
  }
}

</mosaic_0001>

<llo_original>
// kernel: tpu_custom_call.1
$region0: #{tpu_custom_call.1}
  #allocation0 [shape = 'u32[]', space=smem, size = 0x4, offset = 0x4, fixed_abs, tag = 'smem constant byte address 0x4 - core index']
  #allocation1 [shape = 'u32[144,128]{1,0:T(1,128)}', space=vmem, size = 0x12000, scoped, tag = 'internal scratch']
  #allocation2 [shape = 'f32[1,4,128]{2,1,0:T(4,128)}', space=vmem, size = 0x800, scoped, tag = 'scratch operand']
  #allocation3 [shape = 'f32[1,4,128]{2,1,0:T(4,128)}', space=vmem, size = 0x800, scoped, tag = 'scratch operand']
  %s0 = inlined_call_operand.hbm [shape: f32[2,4,2,128], index: 0, kind: input, shape index: {}]
  %s1 = inlined_call_operand.hbm [shape: f32[2,4,2,128], index: 1, kind: input, shape index: {}]
  %s2 = inlined_call_operand.hbm [shape: f32[2,1,4], index: 2, kind: output, shape index: {0}]
  %s3 = inlined_call_operand.hbm [shape: f32[2,1,4], index: 3, kind: output, shape index: {1}]
  %4 = xla_tuple %s2, %s3
  %s5 = sld [smem:[#allocation0]]
  $region65: #{tpu_custom_call.1} parent=0
    _
  %s7 = ssub.s32 1, %s5
  %s8 = scalar_select 0, %s7, %s5
  $region1: #{tpu_custom_call.1} parent=0
    #allocation4 [shape = 'u8[8192]{0}', space=vmem, size = 0x2000, scoped, tag = 'input window, operand 0']
    #allocation5 [shape = 's32[2]{0}', space=sflag, size = 0x8, scoped, tag = 'scoped memory for tpu_custom_call.1']
    #allocation6 [shape = 's32[2]{0}', space=sflag, size = 0x8, scoped, tag = 'scoped memory for tpu_custom_call.1']
    #allocation7 [shape = 'u8[8192]{0}', space=vmem, size = 0x2000, scoped, tag = 'input window, operand 1']
    #allocation8 [shape = 's32[2]{0}', space=sflag, size = 0x8, scoped, tag = 'scoped memory for tpu_custom_call.1']
    #allocation9 [shape = 'u8[1024]{0}', space=vmem, size = 0x400, scoped, tag = 'output window, operand 0']
    #allocation10 [shape = 'u8[1024]{0}', space=vmem, size = 0x400, scoped, tag = 'output window, operand 1']
    #allocation11 [shape = 's32[2]{0}', space=sflag, size = 0x8, scoped, tag = 'scoped memory for tpu_custom_call.1']
    %9 = vsyncpa [#allocation5], 0
    %s10 = scalar_lea.sflag [#allocation5], 1
    %11 = vsyncpa %s10, 0
    %12 = vsyncpa [#allocation8], 0
    %s13 = scalar_lea.sflag [#allocation8], 1
    %14 = vsyncpa %s13, 0
    %15 = vsyncpa [#allocation6], 0
    %s16 = scalar_lea.sflag [#allocation6], 1
    %17 = vsyncpa %s16, 0
    %18 = vsyncpa [#allocation11], 0
    %s19 = scalar_lea.sflag [#allocation11], 1
    %20 = vsyncpa %s19, 0
    loop: start=0, step=1, limit=4
    $region2: #{tpu_custom_call.1} parent=1 // loop_pre_header
      _
    $region3: #{tpu_custom_call.1} parent=1 // loop_header
      %s22 = sphi 0, %s26
      %p23 = scmp.ge.s32.totalorder %s22, 4
      %s29 = sphi 0, %s48
      %s30 = sphi 0, %s44
      %s31 = sphi 0, %s40
      %s32 = sphi 0, %s29
      %s33 = sphi 0, %s30
      %s34 = sphi 0, %s31
      %s35 = sphi 0, %s32
      %s36 = sphi 0, %s33
      %s37 = sphi 0, %s34
      %s55 = sphi 0, %s57
      %s58 = sphi 0, %s55
      %s59 = sphi 0, %s58
      %s75 = sphi 0, %s59
      %s85 = sphi 0, %s87
      %s88 = sphi 0, %s85
      %s89 = sphi 0, %s88
      %s105 = sphi 0, %s89
      %s113 = sphi 0, %s115
      %s116 = sphi 0, %s113
      %s117 = sphi 0, %s116
      %s133 = sphi 0, %s117
      %s141 = sphi 0, %s143
      %s144 = sphi 0, %s141
      %s145 = sphi 0, %s144
      %s161 = sphi 0, %s145
    $region4: #{tpu_custom_call.1} parent=1 // loop_header_branch
      %25 = sbr.rel (%p23) target = $region8
    $region5: #{tpu_custom_call.1} parent=1 // loop_body
      %s27 = ssub.s32 %s22, 1
      %s28 = ssub.s32 %s22, 2
      %s38 = sadd.s32 1, %s31
      %p39 = scmp.ge.s32.totalorder %s38, 1
      %s40 = scalar_select %p39, 0, %s38
      %s41 = sadd.s32 1, %s30
      %s42 = scalar_select %p39, %s41, %s30
      %p43 = scmp.ge.s32.totalorder %s42, 1
      %s44 = scalar_select %p43, 0, %s42
      %s45 = sadd.s32 1, %s29
      %s46 = scalar_select %p43, %s45, %s29
      %p47 = scmp.ge.s32.totalorder %s46, 2
      %s48 = scalar_select %p47, 0, %s46
      %s49 = sadd.s32 %s30, %s31
      %s50 = sadd.s32 %s44, %s40
      %s51 = ssub.s32 %s29, %s48
      %s52 = ssub.s32 %s49, %s50
      %s53 = sor.u32 %s51, %s52
      %p54 = scmp.eq.s32.totalorder %s53, 0
      %s56 = sadd.s32 %s55, 1
      %s57 = scalar_select %p54, %s55, %s56
      %p60 = pneg %p54
      %p61 = scmp.eq.s32.totalorder %s22, 1
      %p62 = por %p60, %p61
      %p63 = scmp.ne.s32.totalorder %s55, %s58
      %p64 = scmp.eq.s32.totalorder %s22, 0
      %p65 = por %p63, %p64
      %p66 = scmp.ne.s32.totalorder %s55, %s58
      %p67 = scmp.eq.s32.totalorder %s27, 1
      %p68 = por %p66, %p67
      %p69 = scmp.ne.s32.totalorder %s58, %s59
      %p70 = scmp.eq.s32.totalorder %s27, 0
      %p71 = por %p69, %p70
      %p72 = scmp.ne.s32.totalorder %s58, %s59
      %p73 = scmp.eq.s32.totalorder %s28, 1
      %p74 = por %p72, %p73
      %p76 = scmp.ne.s32.totalorder %s59, %s75
      %p77 = scmp.eq.s32.totalorder %s28, 0
      %p78 = por %p76, %p77
      %s79 = sadd.s32 %s30, %s31
      %s80 = sadd.s32 %s44, %s40
      %s81 = ssub.s32 %s29, %s48
      %s82 = ssub.s32 %s79, %s80
      %s83 = sor.u32 %s81, %s82
      %p84 = scmp.eq.s32.totalorder %s83, 0
      %s86 = sadd.s32 %s85, 1
      %s87 = scalar_select %p84, %s85, %s86
      %p90 = pneg %p84
      %p91 = scmp.eq.s32.totalorder %s22, 1
      %p92 = por %p90, %p91
      %p93 = scmp.ne.s32.totalorder %s85, %s88
      %p94 = scmp.eq.s32.totalorder %s22, 0
      %p95 = por %p93, %p94
      %p96 = scmp.ne.s32.totalorder %s85, %s88
      %p97 = scmp.eq.s32.totalorder %s27, 1
      %p98 = por %p96, %p97
      %p99 = scmp.ne.s32.totalorder %s88, %s89
      %p100 = scmp.eq.s32.totalorder %s27, 0
      %p101 = por %p99, %p100
      %p102 = scmp.ne.s32.totalorder %s88, %s89
      %p103 = scmp.eq.s32.totalorder %s28, 1
      %p104 = por %p102, %p103
      %p106 = scmp.ne.s32.totalorder %s89, %s105
      %p107 = scmp.eq.s32.totalorder %s28, 0
      %p108 = por %p106, %p107
      %s109 = sadd.s32 %s29, %s30
      %s110 = sadd.s32 %s48, %s44
      %s111 = ssub.s32 %s109, %s110
      %p112 = scmp.eq.s32.totalorder %s111, 0
      %s114 = sadd.s32 %s113, 1
      %s115 = scalar_select %p112, %s113, %s114
      %p118 = pneg %p112
      %p119 = scmp.eq.s32.totalorder %s22, 1
      %p120 = por %p118, %p119
      %p121 = scmp.ne.s32.totalorder %s113, %s116
      %p122 = scmp.eq.s32.totalorder %s22, 0
      %p123 = por %p121, %p122
      %p124 = scmp.ne.s32.totalorder %s113, %s116
      %p125 = scmp.eq.s32.totalorder %s27, 1
      %p126 = por %p124, %p125
      %p127 = scmp.ne.s32.totalorder %s116, %s117
      %p128 = scmp.eq.s32.totalorder %s27, 0
      %p129 = por %p127, %p128
      %p130 = scmp.ne.s32.totalorder %s116, %s117
      %p131 = scmp.eq.s32.totalorder %s28, 1
      %p132 = por %p130, %p131
      %p134 = scmp.ne.s32.totalorder %s117, %s133
      %p135 = scmp.eq.s32.totalorder %s28, 0
      %p136 = por %p134, %p135
      %s137 = sadd.s32 %s29, %s30
      %s138 = sadd.s32 %s48, %s44
      %s139 = ssub.s32 %s137, %s138
      %p140 = scmp.eq.s32.totalorder %s139, 0
      %s142 = sadd.s32 %s141, 1
      %s143 = scalar_select %p140, %s141, %s142
      %p146 = pneg %p140
      %p147 = scmp.eq.s32.totalorder %s22, 1
      %p148 = por %p146, %p147
      %p149 = scmp.ne.s32.totalorder %s141, %s144
      %p150 = scmp.eq.s32.totalorder %s22, 0
      %p151 = por %p149, %p150
      %p152 = scmp.ne.s32.totalorder %s141, %s144
      %p153 = scmp.eq.s32.totalorder %s27, 1
      %p154 = por %p152, %p153
      %p155 = scmp.ne.s32.totalorder %s144, %s145
      %p156 = scmp.eq.s32.totalorder %s27, 0
      %p157 = por %p155, %p156
      %p158 = scmp.ne.s32.totalorder %s144, %s145
      %p159 = scmp.eq.s32.totalorder %s28, 1
      %p160 = por %p158, %p159
      %p162 = scmp.ne.s32.totalorder %s145, %s161
      %p163 = scmp.eq.s32.totalorder %s28, 0
      %p164 = por %p162, %p163
      %p165 = scmp.le.s32.totalorder 1, %s22
      %p166 = scmp.lt.s32.totalorder %s22, 3
      %p167 = pnand %p165, %p166
      %p168 = pneg %p167
      // Predicated region
      $region9: #{tpu_custom_call.1} parent=5 // pred_check
        _
      $region10: #{tpu_custom_call.1} parent=5 // pred_check_branch
        %170 = sbr.rel (%p167) target = $region12
      $region11: #{tpu_custom_call.1} parent=5 // pred_region
        %s171 = ssub.s32 %s22, 1
      $region12: #{tpu_custom_call.1} parent=5 // pred_fallthru
        _
      %p172 = scmp.lt.s32.totalorder %s22, 2
      // Predicated region
      $region13: #{tpu_custom_call.1} parent=5 // pred_check
        %p173 = pneg %p172
      $region14: #{tpu_custom_call.1} parent=5 // pred_check_branch
        %175 = sbr.rel (%p173) target = $region16
      $region15: #{tpu_custom_call.1} parent=5 // pred_region
        // Predicated region
        $region17: #{tpu_custom_call.1} parent=15 // pred_check
          %p176 = pneg %p65
        $region18: #{tpu_custom_call.1} parent=15 // pred_check_branch
          %178 = sbr.rel (%p176) target = $region20
        $region19: #{tpu_custom_call.1} parent=15 // pred_region
          %s179 = sand.u32 %s55, 1
          %s180 = scalar_lea.sflag [#allocation5], %s179
          %s181 = sand.u32 %s55, 1
          %s182 = smul.addr %s181, 8
          %s183 = scalar_lea.vmem [#allocation4], %s182
          %s184 = sadd.s32 %s30, %s31
          %s186 = ssub.s32 128, 128
          %187 = vsyncadd %s180, %s186
          %s188 = smul.addr %s29, 4
          %s189 = sadd.s32 %s184, %s188
          %s190 = smul.addr %s189, 32
          %s191 = scalar_lea.hbm %s0, %s190
          %s192 = sshll.u32 %s183, 4
          %s193 = int_to_ptr.vmem [resolvable:$true] %s192
          %198 = dma.hbm_to_vmem [thread:$0]  %s191, 128, %s193, %s180, 32, 32, 2
        $region20: #{tpu_custom_call.1} parent=15 // pred_fallthru
          _
        // Predicated region
        $region21: #{tpu_custom_call.1} parent=15 // pred_check
          %p199 = pneg %p95
        $region22: #{tpu_custom_call.1} parent=15 // pred_check_branch
          %201 = sbr.rel (%p199) target = $region24
        $region23: #{tpu_custom_call.1} parent=15 // pred_region
          %s202 = sand.u32 %s85, 1
          %s203 = scalar_lea.sflag [#allocation8], %s202
          %s204 = sand.u32 %s85, 1
          %s205 = smul.addr %s204, 8
          %s206 = scalar_lea.vmem [#allocation7], %s205
          %s207 = sadd.s32 %s30, %s31
          %s209 = ssub.s32 128, 128
          %210 = vsyncadd %s203, %s209
          %s211 = smul.addr %s29, 4
          %s212 = sadd.s32 %s207, %s211
          %s213 = smul.addr %s212, 32
          %s214 = scalar_lea.hbm %s1, %s213
          %s215 = sshll.u32 %s206, 4
          %s216 = int_to_ptr.vmem [resolvable:$true] %s215
          %221 = dma.hbm_to_vmem [thread:$0]  %s214, 128, %s216, %s203, 32, 32, 2
        $region24: #{tpu_custom_call.1} parent=15 // pred_fallthru
          _
      $region16: #{tpu_custom_call.1} parent=5 // pred_fallthru
        _
      %p222 = scmp.le.s32.totalorder 1, %s22
      %p223 = scmp.lt.s32.totalorder %s22, 3
      %p224 = pnand %p222, %p223
      %p225 = pneg %p224
      // Predicated region
      $region25: #{tpu_custom_call.1} parent=5 // pred_check
        _
      $region26: #{tpu_custom_call.1} parent=5 // pred_check_branch
        %227 = sbr.rel (%p224) target = $region28
      $region27: #{tpu_custom_call.1} parent=5 // pred_region
        %s228 = ssub.s32 %s22, 1
        %s229 = sand.u32 %s58, 1
        %s230 = scalar_lea.sflag [#allocation5], %s229
        %s231 = sand.u32 %s58, 1
        %s232 = smul.addr %s231, 8
        %s233 = scalar_lea.vmem [#allocation4], %s232
        // Predicated region
        $region29: #{tpu_custom_call.1} parent=27 // pred_check
          %p234 = pneg %p71
        $region30: #{tpu_custom_call.1} parent=27 // pred_check_branch
          %236 = sbr.rel (%p234) target = $region32
        $region31: #{tpu_custom_call.1} parent=27 // pred_region
          %237 = dma.done %s230, 128
        $region32: #{tpu_custom_call.1} parent=27 // pred_fallthru
          _
        %s238 = sand.u32 %s88, 1
        %s239 = scalar_lea.sflag [#allocation8], %s238
        %s240 = sand.u32 %s88, 1
        %s241 = smul.addr %s240, 8
        %s242 = scalar_lea.vmem [#allocation7], %s241
        // Predicated region
        $region33: #{tpu_custom_call.1} parent=27 // pred_check
          %p243 = pneg %p101
        $region34: #{tpu_custom_call.1} parent=27 // pred_check_branch
          %245 = sbr.rel (%p243) target = $region36
        $region35: #{tpu_custom_call.1} parent=27 // pred_region
          %246 = dma.done %s239, 128
        $region36: #{tpu_custom_call.1} parent=27 // pred_fallthru
          _
        %s247 = sand.u32 %s58, 1
        %s248 = scalar_lea.sflag [#allocation5], %s247
        %s249 = sand.u32 %s58, 1
        %s250 = smul.addr %s249, 8
        %s251 = scalar_lea.vmem [#allocation4], %s250
        %p252 = pneg %p71
        %p253 = pneg %p68
        %s254 = sand.u32 %s88, 1
        %s255 = scalar_lea.sflag [#allocation8], %s254
        %s256 = sand.u32 %s88, 1
        %s257 = smul.addr %s256, 8
        %s258 = scalar_lea.vmem [#allocation7], %s257
        %p259 = pneg %p101
        %p260 = pneg %p98
        %p261 = pneg %p129
        %p262 = pneg %p126
        %s263 = sand.u32 %s116, 1
        %s264 = scalar_lea.sflag [#allocation6], %s263
        %s265 = sand.u32 %s116, 1
        %s266 = scalar_lea.vmem [#allocation9], %s265
        %p267 = pneg %p157
        %p268 = pneg %p154
        %s269 = sand.u32 %s144, 1
        %s270 = scalar_lea.sflag [#allocation11], %s269
        %s271 = sand.u32 %s144, 1
        %s272 = scalar_lea.vmem [#allocation10], %s271
        %s273 = sadd.s32 %s33, %s34
        %s274 = sadd.s32 %s33, %s34
        %s275 = sadd.s32 %s32, %s33
        %s276 = sadd.s32 %s32, %s33
        %p277 = scmp.eq.s32.totalorder %s34, 0
        // Predicated region
        $region37: #{tpu_custom_call.1} parent=27 // pred_check
          %p278 = pneg %p277
        $region38: #{tpu_custom_call.1} parent=27 // pred_check_branch
          %280 = sbr.rel (%p278) target = $region40
        $region39: #{tpu_custom_call.1} parent=27 // pred_region
          %281 = vst [vmem:[#allocation2] sm:$0xf] 0.0
          %282 = vst [vmem:[#allocation3] sm:$0xf] 0.0
        $region40: #{tpu_custom_call.1} parent=27 // pred_fallthru
          _
        %v283 = vld [vmem:[%s233] sm:$0x3]
        %v284 = vld [vmem:[%s233 + $0x2] sm:$0x3]
        %v285 = vld [vmem:[%s233 + $0x4] sm:$0x3]
        %v286 = vld [vmem:[%s233 + $0x6] sm:$0x3]
        %v287 = vld [vmem:[%s242] sm:$0x3]
        %v288 = vld [vmem:[%s242 + $0x2] sm:$0x3]
        %v289 = vld [vmem:[%s242 + $0x4] sm:$0x3]
        %v290 = vld [vmem:[%s242 + $0x6] sm:$0x3]
        %v291 = vld [vmem:[#allocation2] sm:$0xf]
        %v292 = vmul.f32 %v283, %v287
        %v293 = vmul.f32 %v284, %v288
        %v294 = vmul.f32 %v285, %v289
        %v295 = vmul.f32 %v286, %v290
        %vm296 = vcmask 1041408
        %v297 = vsel %vm296, %v292, 0.0
        %v298 = vrot.slane %v297, 4
        %v299 = vadd.f32 %v297, %v298
        %v300 = vrot.slane %v299, 2
        %v301 = vadd.f32 %v299, %v300
        %v302 = vrot.slane %v301, 1
        %v303 = vadd.f32 %v301, %v302
        %v304 = vsel %vm296, %v293, 0.0
        %v305 = vrot.slane %v304, 4
        %v306 = vadd.f32 %v304, %v305
        %v307 = vrot.slane %v306, 2
        %v308 = vadd.f32 %v306, %v307
        %v309 = vrot.slane %v308, 1
        %v310 = vadd.f32 %v308, %v309
        %v311 = vsel %vm296, %v294, 0.0
        %v312 = vrot.slane %v311, 4
        %v313 = vadd.f32 %v311, %v312
        %v314 = vrot.slane %v313, 2
        %v315 = vadd.f32 %v313, %v314
        %v316 = vrot.slane %v315, 1
        %v317 = vadd.f32 %v315, %v316
        %v318 = vsel %vm296, %v295, 0.0
        %v319 = vrot.slane %v318, 4
        %v320 = vadd.f32 %v318, %v319
        %v321 = vrot.slane %v320, 2
        %v322 = vadd.f32 %v320, %v321
        %v323 = vrot.slane %v322, 1
        %v324 = vadd.f32 %v322, %v323
        %vm329 = vcmask 1041409
        %v330 = vsel %vm329, %v310, %v303
        %vm331 = vcmask 1042434
        %v332 = vsel %vm331, %v317, %v330
        %vm333 = vcmask 1043459
        %v334 = vsel %vm333, %v324, %v332
        %v336 = vadd.f32 %v291, %v334
        %337 = vst [vmem:[#allocation2] sm:$0xf] %v336
        %v338 = vld [vmem:[#allocation3] sm:$0xf]
        %v339 = vadd.f32 %v283, %v287
        %v340 = vadd.f32 %v284, %v288
        %v341 = vadd.f32 %v285, %v289
        %v342 = vadd.f32 %v286, %v290
        %v343 = vsel %vm296, %v339, 0.0
        %v344 = vrot.slane %v343, 4
        %v345 = vadd.f32 %v343, %v344
        %v346 = vrot.slane %v345, 2
        %v347 = vadd.f32 %v345, %v346
        %v348 = vrot.slane %v347, 1
        %v349 = vadd.f32 %v347, %v348
        %v350 = vsel %vm296, %v340, 0.0
        %v351 = vrot.slane %v350, 4
        %v352 = vadd.f32 %v350, %v351
        %v353 = vrot.slane %v352, 2
        %v354 = vadd.f32 %v352, %v353
        %v355 = vrot.slane %v354, 1
        %v356 = vadd.f32 %v354, %v355
        %v357 = vsel %vm296, %v341, 0.0
        %v358 = vrot.slane %v357, 4
        %v359 = vadd.f32 %v357, %v358
        %v360 = vrot.slane %v359, 2
        %v361 = vadd.f32 %v359, %v360
        %v362 = vrot.slane %v361, 1
        %v363 = vadd.f32 %v361, %v362
        %v364 = vsel %vm296, %v342, 0.0
        %v365 = vrot.slane %v364, 4
        %v366 = vadd.f32 %v364, %v365
        %v367 = vrot.slane %v366, 2
        %v368 = vadd.f32 %v366, %v367
        %v369 = vrot.slane %v368, 1
        %v370 = vadd.f32 %v368, %v369
        %v375 = vsel %vm329, %v356, %v349
        %v376 = vsel %vm331, %v363, %v375
        %v377 = vsel %vm333, %v370, %v376
        %v379 = vadd.f32 %v338, %v377
        %380 = vst [vmem:[#allocation3] sm:$0xf] %v379
        // Predicated region
        $region41: #{tpu_custom_call.1} parent=27 // pred_check
          %p381 = pneg %p277
        $region42: #{tpu_custom_call.1} parent=27 // pred_check_branch
          %383 = sbr.rel (%p381) target = $region44
        $region43: #{tpu_custom_call.1} parent=27 // pred_region
          %v384 = vld [vmem:[#allocation2] sm:$0xf]
          %vm385 = vcmask 1043456
          %v386 = vsel %vm385, %v384, 0.0
          %387 = vadd.xlane.f32.xlu0 %v386
          %v388 = vpop.xlane.xlu0 %387
          %v390 = vlaneseq
          %v391 = vand.u32 %v390, 127
          %v392 = vlaneseq
          %v393 = vshrl.u32 %v392, 7
          %v394 = vsub.s32 %v391, %v393
          %v395 = vrot.slane %v388, %v394
          %vm397 = vcmask 24576
          %398 = vst.msk [vmem:[%s266] sm:$0x1] %vm397, %v395
          %v399 = vld [vmem:[#allocation3] sm:$0xf]
          %v400 = vsel %vm385, %v399, 0.0
          %401 = vadd.xlane.f32.xlu0 %v400
          %v402 = vpop.xlane.xlu0 %401
          %v404 = vlaneseq
          %v405 = vshrl.u32 %v404, 7
          %v406 = vsub.s32 %v391, %v405
          %v407 = vrot.slane %v402, %v406
          %409 = vst.msk [vmem:[%s272] sm:$0x1] %vm397, %v407
        $region44: #{tpu_custom_call.1} parent=27 // pred_fallthru
          _
        %s410 = sand.u32 %s116, 1
        %s411 = scalar_lea.sflag [#allocation6], %s410
        %s412 = sand.u32 %s116, 1
        %s413 = scalar_lea.vmem [#allocation9], %s412
        %s414 = sand.u32 %s144, 1
        %s415 = scalar_lea.sflag [#allocation11], %s414
        %s416 = sand.u32 %s144, 1
        %s417 = scalar_lea.vmem [#allocation10], %s416
        // Predicated region
        $region45: #{tpu_custom_call.1} parent=27 // pred_check
          %p418 = pneg %p126
        $region46: #{tpu_custom_call.1} parent=27 // pred_check_branch
          %420 = sbr.rel (%p418) target = $region48
        $region47: #{tpu_custom_call.1} parent=27 // pred_region
          %s421 = sadd.s32 %s32, %s33
          %s423 = ssub.s32 16, 16
          %424 = vsyncadd %s411, %s423
          %s425 = smul.addr %s421, 16
          %s426 = scalar_lea.hbm %s2, %s425
          %s428 = sshll.u32 %s413, 4
          %s429 = int_to_ptr.vmem [resolvable:$true] %s428
          %431 = dma.vmem_to_hbm [thread:$0]  %s429, 16, %s426, %s411
        $region48: #{tpu_custom_call.1} parent=27 // pred_fallthru
          _
        // Predicated region
        $region49: #{tpu_custom_call.1} parent=27 // pred_check
          %p432 = pneg %p154
        $region50: #{tpu_custom_call.1} parent=27 // pred_check_branch
          %434 = sbr.rel (%p432) target = $region52
        $region51: #{tpu_custom_call.1} parent=27 // pred_region
          %s435 = sadd.s32 %s32, %s33
          %s437 = ssub.s32 16, 16
          %438 = vsyncadd %s415, %s437
          %s439 = smul.addr %s435, 16
          %s440 = scalar_lea.hbm %s3, %s439
          %s442 = sshll.u32 %s417, 4
          %s443 = int_to_ptr.vmem [resolvable:$true] %s442
          %445 = dma.vmem_to_hbm [thread:$0]  %s443, 16, %s440, %s415
        $region52: #{tpu_custom_call.1} parent=27 // pred_fallthru
          _
      $region28: #{tpu_custom_call.1} parent=5 // pred_fallthru
        _
      %p446 = scmp.le.s32.totalorder 2, %s22
      // Predicated region
      $region53: #{tpu_custom_call.1} parent=5 // pred_check
        %p447 = pneg %p446
      $region54: #{tpu_custom_call.1} parent=5 // pred_check_branch
        %449 = sbr.rel (%p447) target = $region56
      $region55: #{tpu_custom_call.1} parent=5 // pred_region
        %s450 = ssub.s32 %s22, 2
        // Predicated region
        $region57: #{tpu_custom_call.1} parent=55 // pred_check
          %p451 = pneg %p132
        $region58: #{tpu_custom_call.1} parent=55 // pred_check_branch
          %453 = sbr.rel (%p451) target = $region60
        $region59: #{tpu_custom_call.1} parent=55 // pred_region
          %s454 = sand.u32 %s117, 1
          %s455 = scalar_lea.sflag [#allocation6], %s454
          %s456 = sand.u32 %s117, 1
          %s457 = scalar_lea.vmem [#allocation9], %s456
          %458 = dma.done %s455, 16
        $region60: #{tpu_custom_call.1} parent=55 // pred_fallthru
          _
        // Predicated region
        $region61: #{tpu_custom_call.1} parent=55 // pred_check
          %p459 = pneg %p160
        $region62: #{tpu_custom_call.1} parent=55 // pred_check_branch
          %461 = sbr.rel (%p459) target = $region64
        $region63: #{tpu_custom_call.1} parent=55 // pred_region
          %s462 = sand.u32 %s145, 1
          %s463 = scalar_lea.sflag [#allocation11], %s462
          %s464 = sand.u32 %s145, 1
          %s465 = scalar_lea.vmem [#allocation10], %s464
          %466 = dma.done %s463, 16
        $region64: #{tpu_custom_call.1} parent=55 // pred_fallthru
          _
      $region56: #{tpu_custom_call.1} parent=5 // pred_fallthru
        _
    $region6: #{tpu_custom_call.1} parent=1 // loop_footer
      %s26 = sadd.s32 1, %s22
    $region7: #{tpu_custom_call.1} parent=1 // loop_footer_branch
      %21 = sbr.rel target = $region3
    $region8: #{tpu_custom_call.1} parent=1 // loop_exit
      _
    %467 = vsyncpa [#allocation5], 1
    %s468 = scalar_lea.sflag [#allocation5], 1
    %469 = vsyncpa %s468, 1
    %470 = vsyncpa [#allocation8], 1
    %s471 = scalar_lea.sflag [#allocation8], 1
    %472 = vsyncpa %s471, 1
    %473 = vsyncpa [#allocation6], 1
    %s474 = scalar_lea.sflag [#allocation6], 1
    %475 = vsyncpa %s474, 1
    %476 = vsyncpa [#allocation11], 1
    %s477 = scalar_lea.sflag [#allocation11], 1
    %478 = vsyncpa %s477, 1

</llo_original>
